<compile_context>
chip_gen: v7x
topology: tpu7x:2x2x1
jax: 0.10.0
libtpu: 0.0.40
codegen_flags: <defaults>
</compile_context>

<pallas_src>
import functools

import jax
import jax.numpy as jnp
from jax.experimental import pallas as pl
from jax.experimental.pallas import tpu as pltpu

_F32_EPS = float(jnp.finfo(jnp.float32).eps)

# Lane-tile cap. Sublane-padding-aware budget per step (double-buffered):
#   logits (1,C,T):  2 * 8 sublanes * 4 B * T   = 64*T
#   target (1,1,T):  2 * 8 sublanes * 4 B * T   = 64*T
#   scratch 2x(1,T): 2 * 8 sublanes * 4 B * T   = 64*T
# => ~192*T bytes + in-body intermediates; 32768 lanes ~= 6 MiB of blocks, safe everywhere.
_DEFAULT_TILE_CAP = 32768


def _round_up(x: int, m: int) -> int:
    return ((x + m - 1) // m) * m


def _loss_kernel(logits_ref, tgt_ref, w_ref, losssum_ref, wsum_ref, *acc_refs,
                 adnet: bool, hw: int, hw_tile: int, tiles_per_split: int,
                 needs_mask: bool):
    multi_tile = bool(acc_refs)
    s = pl.program_id(1)   # spatial split (parallel)
    t = pl.program_id(2)   # spatial tile within split (accumulation axis)

    if multi_tile:
        acc_loss_ref, acc_w_ref = acc_refs

        @pl.when(t == 0)
        def _():
            acc_loss_ref[...] = jnp.zeros_like(acc_loss_ref)
            acc_w_ref[...] = jnp.zeros_like(acc_w_ref)

    # (C, T): classes on sublanes, pixels lane-dense. Upcast AFTER the DMA
    # (f32 compute everywhere — required on v5e which has no bf16 VPU/EUP path).
    x = logits_ref[0].astype(jnp.float32)          # (C, T)
    tgt = tgt_ref[0].astype(jnp.int32)             # (1, T) — narrow dtype upcast in-kernel

    cls_ids = jax.lax.broadcasted_iota(jnp.int32, x.shape, dimension=0)  # (C, T)
    onehot = (cls_ids == tgt).astype(jnp.float32)                        # shared gather mask

    # Gather the target entry once; reused by both branches.
    xt = jnp.sum(onehot * x, axis=0, keepdims=True)                      # (1, T)

    if adnet:
        # ADNet: inputs are probabilities; clamp+log only on the gathered (1,T) row
        # -> 1 transcendental per pixel instead of C.
        px_nll = -jnp.log(jnp.clip(xt, _F32_EPS, 1.0 - _F32_EPS))        # (1, T)
    else:
        # CrossEntropyLoss: stable log-sum-exp over the class (sublane) axis;
        # nll = lse - x[target], no (C,T) logp materialization.
        m = jnp.max(x, axis=0, keepdims=True)                            # (1, T)
        lse = jnp.log(jnp.sum(jnp.exp(x - m), axis=0, keepdims=True)) + m
        px_nll = lse - xt                                                # (1, T)

    w = w_ref[...].astype(jnp.float32)                                   # (C, 1)
    px_w = jnp.sum(onehot * w, axis=0, keepdims=True)                    # (1, T) weight[target]

    contrib = px_w * px_nll                                              # (1, T)

    if needs_mask:
        # Ragged boundary / duplicated (clamped) tiles: mask the PRODUCT as well as the
        # weight so garbage-driven NaN/inf past the array end contributes exactly zero.
        col = (s * tiles_per_split + t) * hw_tile + \
            jax.lax.broadcasted_iota(jnp.int32, (1, hw_tile), dimension=1)
        valid = col < hw
        contrib = jnp.where(valid, contrib, 0.0)
        px_w = jnp.where(valid, px_w, 0.0)

    if multi_tile:
        acc_loss_ref[...] += contrib
        acc_w_ref[...] += px_w

        @pl.when(t == pl.num_programs(2) - 1)
        def _():
            # Single deferred cross-lane reduction per (batch, split).
            losssum_ref[...] = jnp.sum(acc_loss_ref[...]).reshape(1, 1, 1)
            wsum_ref[...] = jnp.sum(acc_w_ref[...]).reshape(1, 1, 1)
    else:
        # One tile per split: reduce directly, no scratch traffic.
        losssum_ref[...] = jnp.sum(contrib).reshape(1, 1, 1)
        wsum_ref[...] = jnp.sum(px_w).reshape(1, 1, 1)


def model_loss(output, target, model_name: str, weights=None, *,
               hw_tile_cap: int = _DEFAULT_TILE_CAP):
    """output: (N, C, H, W); target: (N, H, W) int. Returns scalar f32 loss."""
    n, c, h, w_sp = output.shape
    hw = h * w_sp

    # Module semantics: unknown model names use plain (unweighted) CrossEntropyLoss.
    if model_name not in ("PANet", "ALPNet", "ADNet"):
        weights = None

    # NCHW kept as-is: pure reshape views; no transpose, no pad, no dtype cast in HBM.
    logits = output.reshape(n, c, hw)
    if jnp.issubdtype(target.dtype, jnp.floating) or target.dtype.itemsize > 4:
        target = target.astype(jnp.int32)   # safety only (e.g. x64 int64 targets)
    tgt = target.reshape(n, 1, hw)          # narrow dtype preserved across the boundary

    if weights is None:
        weights = jnp.ones((c,), dtype=jnp.float32)
    w2d = jnp.asarray(weights, dtype=jnp.float32).reshape(c, 1)

    # --- spatial tiling -------------------------------------------------------------
    cap = max(128, (hw_tile_cap // 128) * 128)
    hw_tile = hw if hw <= cap else cap      # full image per step when it fits
    # v7x: when the batch axis can't feed both TensorCores, force >=2 spatial tiles so
    # the size-2 parallel split below has real work per core. Cheap no-op on v5e/v6e.
    if n < 2 and hw >= 8192:
        hw_tile = min(hw_tile, _round_up(pl.cdiv(hw, 2), 128))

    total_tiles = pl.cdiv(hw, hw_tile)
    split = 2 if total_tiles >= 2 else 1
    tiles_per_split = pl.cdiv(total_tiles, split)
    covered = split * tiles_per_split * hw_tile
    needs_mask = covered != hw
    clamp = split * tiles_per_split > total_tiles
    last_tile = total_tiles - 1

    if clamp:
        def tile_idx(s, t):
            return jnp.minimum(s * tiles_per_split + t, last_tile)
    else:
        def tile_idx(s, t):
            return s * tiles_per_split + t

    adnet = model_name == "ADNet"
    multi_tile = tiles_per_split > 1
    kernel = functools.partial(
        _loss_kernel, adnet=adnet, hw=hw, hw_tile=hw_tile,
        tiles_per_split=tiles_per_split, needs_mask=needs_mask)

    scratch_shapes = (
        [pltpu.VMEM((1, hw_tile), jnp.float32),    # loss accumulator (lane vector)
         pltpu.VMEM((1, hw_tile), jnp.float32)]    # weight accumulator (lane vector)
        if multi_tile else [])

    cost = pl.CostEstimate(
        flops=8 * n * c * hw,
        transcendentals=(n * hw) if adnet else (n * hw * (c + 1)),
        bytes_accessed=(logits.size * logits.dtype.itemsize
                        + tgt.size * tgt.dtype.itemsize
                        + w2d.size * 4 + 2 * n * split * 4),
    )

    losssum, wsum = pl.pallas_call(
        kernel,
        out_shape=(
            jax.ShapeDtypeStruct((n * split, 1, 1), jnp.float32),  # per-(batch,split) loss partials
            jax.ShapeDtypeStruct((n * split, 1, 1), jnp.float32),  # per-(batch,split) weight partials
        ),
        grid_spec=pltpu.PrefetchScalarGridSpec(
            num_scalar_prefetch=0,
            grid=(n, split, tiles_per_split),
            in_specs=[
                pl.BlockSpec((1, c, hw_tile), lambda b, s, t: (b, 0, tile_idx(s, t))),  # logits (C,T)
                pl.BlockSpec((1, 1, hw_tile), lambda b, s, t: (b, 0, tile_idx(s, t))),  # target (1,T)
                pl.BlockSpec((c, 1), lambda b, s, t: (0, 0)),                           # class weights (resident)
            ],
            out_specs=(
                pl.BlockSpec((1, 1, 1), lambda b, s, t: (b * split + s, 0, 0)),
                pl.BlockSpec((1, 1, 1), lambda b, s, t: (b * split + s, 0, 0)),
            ),
            scratch_shapes=scratch_shapes,
        ),
        compiler_params=pltpu.CompilerParams(
            # batch + spatial-split axes parallel (megacore on v7x); tile axis accumulates
            dimension_semantics=("parallel", "parallel", "arbitrary"),
            vmem_limit_bytes=48 * 1024 * 1024,
        ),
        cost_estimate=cost,
    )(logits, tgt, w2d)

    # PyTorch reduction='mean' with class weights = weighted mean.
    # (All-zero target weights -> nan, matching PyTorch.)
    return (jnp.sum(losssum) / jnp.sum(wsum)).astype(jnp.float32)


def _ref_loss(output, target, model_name, weights):
    n, c, h, w_sp = output.shape
    logits = jnp.transpose(output, (0, 2, 3, 1)).reshape(-1, c).astype(jnp.float32)
    tgt = target.reshape(-1).astype(jnp.int32)
    if model_name not in ("PANet", "ALPNet", "ADNet"):
        weights = None
    w = jnp.ones((c,), jnp.float32) if weights is None else jnp.asarray(weights, jnp.float32)
    if model_name == "ADNet":
        logp = jnp.log(jnp.clip(logits, _F32_EPS, 1.0 - _F32_EPS))
    else:
        logp = jax.nn.log_softmax(logits, axis=-1)
    nll = -jnp.take_along_axis(logp, tgt[:, None], axis=-1)[:, 0]
    wt = w[tgt]
    return jnp.sum(wt * nll) / jnp.sum(wt)


if __name__ == "__main__":
    key = jax.random.PRNGKey(0)
    N, C, H, W = 2, 4, 16, 16
    k1, k2, k3, k4, k5, k6 = jax.random.split(key, 6)

    class_weights = jnp.array([1.0, 2.0, 0.5, 1.5], dtype=jnp.float32)

    # 1) PANet / ALPNet path: raw logits + weighted CrossEntropyLoss (single full-image tile).
    logits = jax.random.normal(k1, (N, C, H, W), dtype=jnp.float32)
    target = jax.random.randint(k2, (N, H, W), 0, C, dtype=jnp.int32)
    loss_panet = jax.block_until_ready(model_loss(logits, target, "PANet", class_weights))
    ref_panet = _ref_loss(logits, target, "PANet", class_weights)

    # 2) ADNet path: probabilities -> clamp/log in-kernel -> weighted NLLLoss.
    probs = jax.nn.softmax(jax.random.normal(k3, (N, C, H, W), dtype=jnp.float32), axis=1)
    loss_adnet = jax.block_until_ready(model_loss(probs, target, "ADNet", class_weights))
    ref_adnet = _ref_loss(probs, target, "ADNet", class_weights)

    # 3) Default (unknown model name): plain CrossEntropyLoss, weights ignored.
    loss_default = jax.block_until_ready(model_loss(logits, target, "Other", class_weights))
    ref_default = _ref_loss(logits, target, "Other", None)

    # 4) Ragged spatial extent + tiny tile cap: exercises tiling, split, index clamp and
    #    in-kernel boundary masking (no wrapper pad).
    logits17 = jax.random.normal(k4, (N, C, 17, 17), dtype=jnp.float32)
    target17 = jax.random.randint(k5, (N, 17, 17), 0, C, dtype=jnp.int32)
    loss_masked = jax.block_until_ready(
        model_loss(logits17, target17, "PANet", class_weights, hw_tile_cap=128))
    ref_masked = _ref_loss(logits17, target17, "PANet", class_weights)

    # 5) N == 1 with a larger image: exercises the forced spatial split (v7x both-cores path).
    logits1 = jax.random.normal(k6, (1, C, 96, 96), dtype=jnp.float32)
    target1 = jax.random.randint(k2, (1, 96, 96), 0, C, dtype=jnp.int32)
    loss_split = jax.block_until_ready(model_loss(logits1, target1, "ALPNet", class_weights))
    ref_split = _ref_loss(logits1, target1, "ALPNet", class_weights)

    assert jnp.allclose(loss_panet, ref_panet, rtol=1e-5, atol=1e-5), (loss_panet, ref_panet)
    assert jnp.allclose(loss_adnet, ref_adnet, rtol=1e-5, atol=1e-5), (loss_adnet, ref_adnet)
    assert jnp.allclose(loss_default, ref_default, rtol=1e-5, atol=1e-5), (loss_default, ref_default)
    assert jnp.allclose(loss_masked, ref_masked, rtol=1e-5, atol=1e-5), (loss_masked, ref_masked)
    assert jnp.allclose(loss_split, ref_split, rtol=1e-5, atol=1e-5), (loss_split, ref_split)

    print("KERNEL_OK")
</pallas_src>

<mosaic_0001>
module attributes {stable_mosaic.version = 11 : i64} {
  func.func @_loss_kernel(%arg0: i32, %arg1: i32, %arg2: i32, %arg3: memref<1x4x256xf32, #tpu.memory_space<vmem>>, %arg4: memref<1x1x256xi32, #tpu.memory_space<vmem>>, %arg5: memref<4x1xf32, #tpu.memory_space<vmem>>, %arg6: memref<1x1x1xf32, #tpu.memory_space<vmem>>, %arg7: memref<1x1x1xf32, #tpu.memory_space<vmem>>) attributes {dimension_semantics = [#tpu.dimension_semantics<parallel>, #tpu.dimension_semantics<parallel>, #tpu.dimension_semantics<arbitrary>], iteration_bounds = array<i64: 2, 1, 1>, scalar_prefetch = 0 : i64, scratch_operands = 0 : i64, tpu.core_type = #tpu.core_type<tc>, window_params = [{transform_indices = @transform_0, window_bounds = array<i64: 1, 4, 256>}, {transform_indices = @transform_1, window_bounds = array<i64: 1, 1, 256>}, {pipeline_mode = #tpu.pipeline_mode<synchronous>, transform_indices = @transform_2, window_bounds = array<i64: 4, 1>}, {transform_indices = @transform_3, window_bounds = array<i64: 1, 1, 1>}, {transform_indices = @transform_4, window_bounds = array<i64: 1, 1, 1>}]} {
    %c0 = arith.constant 0 : index
    %c0_0 = arith.constant 0 : index
    %c0_1 = arith.constant 0 : index
    %0 = vector.load %arg3[%c0, %c0_0, %c0_1] : memref<1x4x256xf32, #tpu.memory_space<vmem>>, vector<1x4x256xf32>
    %1 = vector.shape_cast %0 : vector<1x4x256xf32> to vector<4x256xf32>
    %c0_2 = arith.constant 0 : index
    %c0_3 = arith.constant 0 : index
    %c0_4 = arith.constant 0 : index
    %2 = vector.load %arg4[%c0_2, %c0_3, %c0_4] : memref<1x1x256xi32, #tpu.memory_space<vmem>>, vector<1x1x256xi32>
    %3 = vector.shape_cast %2 : vector<1x1x256xi32> to vector<1x256xi32>
    %4 = tpu.iota {dimensions = array<i32: 0>} : vector<4x256xi32>
    %5 = vector.broadcast %3 : vector<1x256xi32> to vector<4x256xi32>
    %6 = arith.cmpi eq, %4, %5 : vector<4x256xi32>
    %7 = arith.extui %6 : vector<4x256xi1> to vector<4x256xi32>
    %8 = arith.sitofp %7 : vector<4x256xi32> to vector<4x256xf32>
    %9 = arith.mulf %8, %1 : vector<4x256xf32>
    %cst = arith.constant dense<0.000000e+00> : vector<256xf32>
    %10 = vector.multi_reduction <add>, %9, %cst [0] : vector<4x256xf32> to vector<256xf32>
    %11 = vector.shape_cast %10 : vector<256xf32> to vector<1x256xf32>
    %cst_5 = arith.constant dense<0xFF800000> : vector<256xf32>
    %12 = vector.multi_reduction <maximumf>, %1, %cst_5 [0] : vector<4x256xf32> to vector<256xf32>
    %13 = vector.shape_cast %12 : vector<256xf32> to vector<1x256xf32>
    %14 = vector.broadcast %13 : vector<1x256xf32> to vector<4x256xf32>
    %15 = arith.subf %1, %14 : vector<4x256xf32>
    %16 = math.exp %15 : vector<4x256xf32>
    %cst_6 = arith.constant dense<0.000000e+00> : vector<256xf32>
    %17 = vector.multi_reduction <add>, %16, %cst_6 [0] : vector<4x256xf32> to vector<256xf32>
    %18 = vector.shape_cast %17 : vector<256xf32> to vector<1x256xf32>
    %19 = math.log %18 : vector<1x256xf32>
    %20 = arith.addf %19, %13 : vector<1x256xf32>
    %21 = arith.subf %20, %11 : vector<1x256xf32>
    %c0_7 = arith.constant 0 : index
    %c0_8 = arith.constant 0 : index
    %22 = vector.load %arg5[%c0_7, %c0_8] : memref<4x1xf32, #tpu.memory_space<vmem>>, vector<4x1xf32>
    %23 = vector.broadcast %22 : vector<4x1xf32> to vector<4x256xf32>
    %24 = arith.mulf %8, %23 : vector<4x256xf32>
    %cst_9 = arith.constant dense<0.000000e+00> : vector<256xf32>
    %25 = vector.multi_reduction <add>, %24, %cst_9 [0] : vector<4x256xf32> to vector<256xf32>
    %26 = vector.shape_cast %25 : vector<256xf32> to vector<1x256xf32>
    %27 = arith.mulf %26, %21 : vector<1x256xf32>
    %28 = vector.shape_cast %27 : vector<1x256xf32> to vector<1x1x256xf32>
    %cst_10 = arith.constant dense<0.000000e+00> : vector<1xf32>
    %29 = vector.multi_reduction <add>, %28, %cst_10 [1, 2] : vector<1x1x256xf32> to vector<1xf32>
    %30 = vector.shape_cast %29 : vector<1xf32> to vector<1x1x1xf32>
    %31 = vector.extract %30[0, 0, 0] : f32 from vector<1x1x1xf32>
    %32 = vector.broadcast %31 : f32 to vector<1x1x1xf32>
    %c0_11 = arith.constant 0 : index
    %c0_12 = arith.constant 0 : index
    %c0_13 = arith.constant 0 : index
    %33 = vector.load %arg6[%c0_11, %c0_12, %c0_13] : memref<1x1x1xf32, #tpu.memory_space<vmem>>, vector<1x1x1xf32>
    tpu.vector_store %arg6[%c0_11, %c0_12, %c0_13], %32 {strides = array<i32>} : memref<1x1x1xf32, #tpu.memory_space<vmem>>, vector<1x1x1xf32>,
    %34 = vector.shape_cast %26 : vector<1x256xf32> to vector<1x1x256xf32>
    %cst_14 = arith.constant dense<0.000000e+00> : vector<1xf32>
    %35 = vector.multi_reduction <add>, %34, %cst_14 [1, 2] : vector<1x1x256xf32> to vector<1xf32>
    %36 = vector.shape_cast %35 : vector<1xf32> to vector<1x1x1xf32>
    %37 = vector.extract %36[0, 0, 0] : f32 from vector<1x1x1xf32>
    %38 = vector.broadcast %37 : f32 to vector<1x1x1xf32>
    %c0_15 = arith.constant 0 : index
    %c0_16 = arith.constant 0 : index
    %c0_17 = arith.constant 0 : index
    %39 = vector.load %arg7[%c0_15, %c0_16, %c0_17] : memref<1x1x1xf32, #tpu.memory_space<vmem>>, vector<1x1x1xf32>
    tpu.vector_store %arg7[%c0_15, %c0_16, %c0_17], %38 {strides = array<i32>} : memref<1x1x1xf32, #tpu.memory_space<vmem>>, vector<1x1x1xf32>,
    return
  }
  func.func @transform_0(%arg0: i32, %arg1: i32, %arg2: i32) -> (i32, i32, i32) {
    %c1_i32 = arith.constant 1 : i32
    %0 = arith.muli %arg1, %c1_i32 : i32
    %1 = arith.addi %0, %arg2 : i32
    %c0_i32 = arith.constant 0 : i32
    %c0_i32_0 = arith.constant 0 : i32
    return %arg0, %c0_i32, %1 : i32, i32, i32
  }
  func.func @transform_1(%arg0: i32, %arg1: i32, %arg2: i32) -> (i32, i32, i32) {
    %c1_i32 = arith.constant 1 : i32
    %0 = arith.muli %arg1, %c1_i32 : i32
    %1 = arith.addi %0, %arg2 : i32
    %c0_i32 = arith.constant 0 : i32
    %c0_i32_0 = arith.constant 0 : i32
    return %arg0, %c0_i32, %1 : i32, i32, i32
  }
  func.func @transform_2(%arg0: i32, %arg1: i32, %arg2: i32) -> (i32, i32) {
    %c0_i32 = arith.constant 0 : i32
    %c0_i32_0 = arith.constant 0 : i32
    %c0_i32_1 = arith.constant 0 : i32
    return %c0_i32, %c0_i32_0 : i32, i32
  }
  func.func @transform_3(%arg0: i32, %arg1: i32, %arg2: i32) -> (i32, i32, i32) {
    %c1_i32 = arith.constant 1 : i32
    %0 = arith.muli %arg0, %c1_i32 : i32
    %1 = arith.addi %0, %arg1 : i32
    %c0_i32 = arith.constant 0 : i32
    %c0_i32_0 = arith.constant 0 : i32
    %c0_i32_1 = arith.constant 0 : i32
    return %1, %c0_i32, %c0_i32_0 : i32, i32, i32
  }
  func.func @transform_4(%arg0: i32, %arg1: i32, %arg2: i32) -> (i32, i32, i32) {
    %c1_i32 = arith.constant 1 : i32
    %0 = arith.muli %arg0, %c1_i32 : i32
    %1 = arith.addi %0, %arg1 : i32
    %c0_i32 = arith.constant 0 : i32
    %c0_i32_0 = arith.constant 0 : i32
    %c0_i32_1 = arith.constant 0 : i32
    return %1, %c0_i32, %c0_i32_0 : i32, i32, i32
  }
}

</mosaic_0001>

<llo_original>
// kernel: tpu_custom_call.1
$region0: #{tpu_custom_call.1}
  #allocation0 [shape = 'u32[]', space=smem, size = 0x4, offset = 0x4, fixed_abs, tag = 'smem constant byte address 0x4 - core index']
  #allocation1 [shape = 'u32[144,128]{1,0:T(1,128)}', space=vmem, size = 0x12000, scoped, tag = 'internal scratch']
  %s0 = inlined_call_operand.hbm [shape: f32[2,4,256], index: 0, kind: input, shape index: {}]
  %s1 = inlined_call_operand.vmem [shape: s32[2,1,256], index: 1, kind: input, shape index: {}]
  %s2 = inlined_call_operand.vmem [shape: f32[4,1], index: 2, kind: input, shape index: {}]
  %s3 = inlined_call_operand.vmem [shape: f32[2,1,1], index: 3, kind: output, shape index: {0}]
  %s4 = inlined_call_operand.vmem [shape: f32[2,1,1], index: 4, kind: output, shape index: {1}]
  %5 = xla_tuple %s3, %s4
  %s6 = sld [smem:[#allocation0]]
  $region57: #{tpu_custom_call.1} parent=0
    _
  %s8 = ssub.s32 1, %s6
  %s9 = scalar_select 0, %s8, %s6
  $region1: #{tpu_custom_call.1} parent=0
    #allocation2 [shape = 'u8[8192]{0}', space=vmem, size = 0x2000, scoped, tag = 'input window, operand 0']
    #allocation3 [shape = 's32[2]{0}', space=sflag, size = 0x8, scoped, tag = 'scoped memory for tpu_custom_call.1']
    %10 = vsyncpa [#allocation3], 0
    %s11 = scalar_lea.sflag [#allocation3], 1
    %12 = vsyncpa %s11, 0
    loop: start=0, step=1, limit=4
    $region2: #{tpu_custom_call.1} parent=1 // loop_pre_header
      _
    $region3: #{tpu_custom_call.1} parent=1 // loop_header
      %s14 = sphi 0, %s18
      %p15 = scmp.ge.s32.totalorder %s14, 4
      %s21 = sphi 0, %s40
      %s22 = sphi 0, %s36
      %s23 = sphi 0, %s32
      %s24 = sphi 0, %s21
      %s25 = sphi 0, %s22
      %s26 = sphi 0, %s23
      %s27 = sphi 0, %s24
      %s28 = sphi 0, %s25
      %s29 = sphi 0, %s26
      %s47 = sphi 0, %s49
      %s50 = sphi 0, %s47
      %s51 = sphi 0, %s50
      %s67 = sphi 0, %s51
      %s77 = sphi 0, %s79
      %s80 = sphi 0, %s77
      %s81 = sphi 0, %s80
      %s97 = sphi 0, %s81
      %s101 = sphi 0, %s101
      %s103 = sphi 0, %s101
      %s104 = sphi 0, %s103
      %s118 = sphi 0, %s104
      %s126 = sphi 0, %s128
      %s129 = sphi 0, %s126
      %s130 = sphi 0, %s129
      %s146 = sphi 0, %s130
      %s154 = sphi 0, %s156
      %s157 = sphi 0, %s154
      %s158 = sphi 0, %s157
      %s174 = sphi 0, %s158
    $region4: #{tpu_custom_call.1} parent=1 // loop_header_branch
      %17 = sbr.rel (%p15) target = $region8
    $region5: #{tpu_custom_call.1} parent=1 // loop_body
      %s19 = ssub.s32 %s14, 1
      %s20 = ssub.s32 %s14, 2
      %s30 = sadd.s32 1, %s23
      %p31 = scmp.ge.s32.totalorder %s30, 1
      %s32 = scalar_select %p31, 0, %s30
      %s33 = sadd.s32 1, %s22
      %s34 = scalar_select %p31, %s33, %s22
      %p35 = scmp.ge.s32.totalorder %s34, 1
      %s36 = scalar_select %p35, 0, %s34
      %s37 = sadd.s32 1, %s21
      %s38 = scalar_select %p35, %s37, %s21
      %p39 = scmp.ge.s32.totalorder %s38, 2
      %s40 = scalar_select %p39, 0, %s38
      %s41 = sadd.s32 %s22, %s23
      %s42 = sadd.s32 %s36, %s32
      %s43 = ssub.s32 %s21, %s40
      %s44 = ssub.s32 %s41, %s42
      %s45 = sor.u32 %s43, %s44
      %p46 = scmp.eq.s32.totalorder %s45, 0
      %s48 = sadd.s32 %s47, 1
      %s49 = scalar_select %p46, %s47, %s48
      %p52 = pneg %p46
      %p53 = scmp.eq.s32.totalorder %s14, 1
      %p54 = por %p52, %p53
      %p55 = scmp.ne.s32.totalorder %s47, %s50
      %p56 = scmp.eq.s32.totalorder %s14, 0
      %p57 = por %p55, %p56
      %p58 = scmp.ne.s32.totalorder %s47, %s50
      %p59 = scmp.eq.s32.totalorder %s19, 1
      %p60 = por %p58, %p59
      %p61 = scmp.ne.s32.totalorder %s50, %s51
      %p62 = scmp.eq.s32.totalorder %s19, 0
      %p63 = por %p61, %p62
      %p64 = scmp.ne.s32.totalorder %s50, %s51
      %p65 = scmp.eq.s32.totalorder %s20, 1
      %p66 = por %p64, %p65
      %p68 = scmp.ne.s32.totalorder %s51, %s67
      %p69 = scmp.eq.s32.totalorder %s20, 0
      %p70 = por %p68, %p69
      %s71 = sadd.s32 %s22, %s23
      %s72 = sadd.s32 %s36, %s32
      %s73 = ssub.s32 %s21, %s40
      %s74 = ssub.s32 %s71, %s72
      %s75 = sor.u32 %s73, %s74
      %p76 = scmp.eq.s32.totalorder %s75, 0
      %s78 = sadd.s32 %s77, 1
      %s79 = scalar_select %p76, %s77, %s78
      %p82 = pneg %p76
      %p83 = scmp.eq.s32.totalorder %s14, 1
      %p84 = por %p82, %p83
      %p85 = scmp.ne.s32.totalorder %s77, %s80
      %p86 = scmp.eq.s32.totalorder %s14, 0
      %p87 = por %p85, %p86
      %p88 = scmp.ne.s32.totalorder %s77, %s80
      %p89 = scmp.eq.s32.totalorder %s19, 1
      %p90 = por %p88, %p89
      %p91 = scmp.ne.s32.totalorder %s80, %s81
      %p92 = scmp.eq.s32.totalorder %s19, 0
      %p93 = por %p91, %p92
      %p94 = scmp.ne.s32.totalorder %s80, %s81
      %p95 = scmp.eq.s32.totalorder %s20, 1
      %p96 = por %p94, %p95
      %p98 = scmp.ne.s32.totalorder %s81, %s97
      %p99 = scmp.eq.s32.totalorder %s20, 0
      %p100 = por %p98, %p99
      %s102 = sadd.s32 %s101, 1
      %p105 = scmp.eq.s32.totalorder %s14, 1
      %p106 = scmp.ne.s32.totalorder %s101, %s103
      %p107 = scmp.eq.s32.totalorder %s14, 0
      %p108 = por %p106, %p107
      %p109 = scmp.ne.s32.totalorder %s101, %s103
      %p110 = scmp.eq.s32.totalorder %s19, 1
      %p111 = por %p109, %p110
      %p112 = scmp.ne.s32.totalorder %s103, %s104
      %p113 = scmp.eq.s32.totalorder %s19, 0
      %p114 = por %p112, %p113
      %p115 = scmp.ne.s32.totalorder %s103, %s104
      %p116 = scmp.eq.s32.totalorder %s20, 1
      %p117 = por %p115, %p116
      %p119 = scmp.ne.s32.totalorder %s104, %s118
      %p120 = scmp.eq.s32.totalorder %s20, 0
      %p121 = por %p119, %p120
      %s122 = sadd.s32 %s21, %s22
      %s123 = sadd.s32 %s40, %s36
      %s124 = ssub.s32 %s122, %s123
      %p125 = scmp.eq.s32.totalorder %s124, 0
      %s127 = sadd.s32 %s126, 1
      %s128 = scalar_select %p125, %s126, %s127
      %p131 = pneg %p125
      %p132 = scmp.eq.s32.totalorder %s14, 1
      %p133 = por %p131, %p132
      %p134 = scmp.ne.s32.totalorder %s126, %s129
      %p135 = scmp.eq.s32.totalorder %s14, 0
      %p136 = por %p134, %p135
      %p137 = scmp.ne.s32.totalorder %s126, %s129
      %p138 = scmp.eq.s32.totalorder %s19, 1
      %p139 = por %p137, %p138
      %p140 = scmp.ne.s32.totalorder %s129, %s130
      %p141 = scmp.eq.s32.totalorder %s19, 0
      %p142 = por %p140, %p141
      %p143 = scmp.ne.s32.totalorder %s129, %s130
      %p144 = scmp.eq.s32.totalorder %s20, 1
      %p145 = por %p143, %p144
      %p147 = scmp.ne.s32.totalorder %s130, %s146
      %p148 = scmp.eq.s32.totalorder %s20, 0
      %p149 = por %p147, %p148
      %s150 = sadd.s32 %s21, %s22
      %s151 = sadd.s32 %s40, %s36
      %s152 = ssub.s32 %s150, %s151
      %p153 = scmp.eq.s32.totalorder %s152, 0
      %s155 = sadd.s32 %s154, 1
      %s156 = scalar_select %p153, %s154, %s155
      %p159 = pneg %p153
      %p160 = scmp.eq.s32.totalorder %s14, 1
      %p161 = por %p159, %p160
      %p162 = scmp.ne.s32.totalorder %s154, %s157
      %p163 = scmp.eq.s32.totalorder %s14, 0
      %p164 = por %p162, %p163
      %p165 = scmp.ne.s32.totalorder %s154, %s157
      %p166 = scmp.eq.s32.totalorder %s19, 1
      %p167 = por %p165, %p166
      %p168 = scmp.ne.s32.totalorder %s157, %s158
      %p169 = scmp.eq.s32.totalorder %s19, 0
      %p170 = por %p168, %p169
      %p171 = scmp.ne.s32.totalorder %s157, %s158
      %p172 = scmp.eq.s32.totalorder %s20, 1
      %p173 = por %p171, %p172
      %p175 = scmp.ne.s32.totalorder %s158, %s174
      %p176 = scmp.eq.s32.totalorder %s20, 0
      %p177 = por %p175, %p176
      %p178 = scmp.le.s32.totalorder 1, %s14
      %p179 = scmp.lt.s32.totalorder %s14, 3
      %p180 = pnand %p178, %p179
      %p181 = pneg %p180
      // Predicated region
      $region9: #{tpu_custom_call.1} parent=5 // pred_check
        _
      $region10: #{tpu_custom_call.1} parent=5 // pred_check_branch
        %183 = sbr.rel (%p180) target = $region12
      $region11: #{tpu_custom_call.1} parent=5 // pred_region
        %s184 = ssub.s32 %s14, 1
        // Predicated region
        $region13: #{tpu_custom_call.1} parent=11 // pred_check
          %p185 = pneg %p114
        $region14: #{tpu_custom_call.1} parent=11 // pred_check_branch
          %187 = sbr.rel (%p185) target = $region16
        $region15: #{tpu_custom_call.1} parent=11 // pred_region
          _
        $region16: #{tpu_custom_call.1} parent=11 // pred_fallthru
          _
      $region12: #{tpu_custom_call.1} parent=5 // pred_fallthru
        _
      %p188 = scmp.lt.s32.totalorder %s14, 2
      // Predicated region
      $region17: #{tpu_custom_call.1} parent=5 // pred_check
        %p189 = pneg %p188
      $region18: #{tpu_custom_call.1} parent=5 // pred_check_branch
        %191 = sbr.rel (%p189) target = $region20
      $region19: #{tpu_custom_call.1} parent=5 // pred_region
        // Predicated region
        $region21: #{tpu_custom_call.1} parent=19 // pred_check
          %p192 = pneg %p57
        $region22: #{tpu_custom_call.1} parent=19 // pred_check_branch
          %194 = sbr.rel (%p192) target = $region24
        $region23: #{tpu_custom_call.1} parent=19 // pred_region
          %s195 = sand.u32 %s47, 1
          %s196 = scalar_lea.sflag [#allocation3], %s195
          %s197 = sand.u32 %s47, 1
          %s198 = smul.addr %s197, 8
          %s199 = scalar_lea.vmem [#allocation2], %s198
          %s200 = sadd.s32 %s22, %s23
          %s201 = smul.u32 2, %s200
          %s203 = ssub.s32 128, 128
          %204 = vsyncadd %s196, %s203
          %s205 = smul.addr %s21, 2
          %s206 = sadd.s32 %s201, %s205
          %s207 = smul.addr %s206, 64
          %s208 = scalar_lea.hbm %s0, %s207
          %s210 = sshll.u32 %s199, 4
          %s211 = int_to_ptr.vmem [resolvable:$true] %s210
          %213 = dma.hbm_to_vmem [thread:$0]  %s208, 128, %s211, %s196
        $region24: #{tpu_custom_call.1} parent=19 // pred_fallthru
          _
        // Predicated region
        $region25: #{tpu_custom_call.1} parent=19 // pred_check
          %p214 = pneg %p87
        $region26: #{tpu_custom_call.1} parent=19 // pred_check_branch
          %216 = sbr.rel (%p214) target = $region28
        $region27: #{tpu_custom_call.1} parent=19 // pred_region
          %s217 = sadd.s32 %s22, %s23
          %s218 = smul.u32 2, %s217
          %p219 = scmp.lt.s32.totalorder %s21, 1
          %s220 = scalar_select %p219, %s21, 1
          %p221 = scmp.lt.s32.totalorder %s218, 1
          %s222 = scalar_select %p221, %s218, 1
          %s223 = smul.addr %s220, 2
          %s224 = sadd.s32 %s222, %s223
          %s225 = scalar_lea.vmem %s1, %s224
          %s226 = sadd.s32 %s22, %s23
          %s227 = smul.u32 2, %s226
        $region28: #{tpu_custom_call.1} parent=19 // pred_fallthru
          _
      $region20: #{tpu_custom_call.1} parent=5 // pred_fallthru
        _
      %p228 = scmp.le.s32.totalorder 1, %s14
      %p229 = scmp.lt.s32.totalorder %s14, 3
      %p230 = pnand %p228, %p229
      %p231 = pneg %p230
      // Predicated region
      $region29: #{tpu_custom_call.1} parent=5 // pred_check
        _
      $region30: #{tpu_custom_call.1} parent=5 // pred_check_branch
        %233 = sbr.rel (%p230) target = $region32
      $region31: #{tpu_custom_call.1} parent=5 // pred_region
        %s234 = ssub.s32 %s14, 1
        %s235 = sand.u32 %s50, 1
        %s236 = scalar_lea.sflag [#allocation3], %s235
        %s237 = sand.u32 %s50, 1
        %s238 = smul.addr %s237, 8
        %s239 = scalar_lea.vmem [#allocation2], %s238
        // Predicated region
        $region33: #{tpu_custom_call.1} parent=31 // pred_check
          %p240 = pneg %p63
        $region34: #{tpu_custom_call.1} parent=31 // pred_check_branch
          %242 = sbr.rel (%p240) target = $region36
        $region35: #{tpu_custom_call.1} parent=31 // pred_region
          %243 = dma.done %s236, 128
        $region36: #{tpu_custom_call.1} parent=31 // pred_fallthru
          _
        %s244 = sand.u32 %s50, 1
        %s245 = scalar_lea.sflag [#allocation3], %s244
        %s246 = sand.u32 %s50, 1
        %s247 = smul.addr %s246, 8
        %s248 = scalar_lea.vmem [#allocation2], %s247
        %p249 = pneg %p63
        %p250 = pneg %p60
        %s251 = sadd.s32 %s25, %s26
        %s252 = smul.u32 2, %s251
        %p253 = scmp.lt.s32.totalorder %s24, 1
        %s254 = scalar_select %p253, %s24, 1
        %p255 = scmp.lt.s32.totalorder %s252, 1
        %s256 = scalar_select %p255, %s252, 1
        %s257 = smul.addr %s254, 2
        %s258 = sadd.s32 %s256, %s257
        %s259 = scalar_lea.vmem %s1, %s258
        %p260 = pneg %p93
        %p261 = pneg %p90
        %p262 = pneg %p114
        %p263 = pneg %p111
        %p264 = pneg %p142
        %p265 = pneg %p139
        %s266 = sadd.s32 %s24, %s25
        %p267 = scmp.lt.s32.totalorder %s266, 1
        %s268 = scalar_select %p267, %s266, 1
        %s269 = scalar_lea.vmem %s3, %s268
        %p270 = pneg %p170
        %p271 = pneg %p167
        %s272 = sadd.s32 %s24, %s25
        %p273 = scmp.lt.s32.totalorder %s272, 1
        %s274 = scalar_select %p273, %s272, 1
        %s275 = scalar_lea.vmem %s4, %s274
        %s276 = sadd.s32 %s25, %s26
        %s277 = smul.u32 2, %s276
        %s278 = sadd.s32 %s25, %s26
        %s279 = smul.u32 2, %s278
        %p280 = scmp.lt.s32.totalorder %s24, 1
        %s281 = scalar_select %p280, %s24, 1
        %p282 = scmp.lt.s32.totalorder %s279, 1
        %s283 = scalar_select %p282, %s279, 1
        %s284 = smul.addr %s281, 2
        %s285 = sadd.s32 %s283, %s284
        %s286 = scalar_lea.vmem %s1, %s285
        %s287 = sadd.s32 %s25, %s26
        %s288 = smul.u32 2, %s287
        %s289 = sadd.s32 %s24, %s25
        %p290 = scmp.lt.s32.totalorder %s289, 1
        %s291 = scalar_select %p290, %s289, 1
        %s292 = scalar_lea.vmem %s3, %s291
        %s293 = sadd.s32 %s24, %s25
        %s294 = sadd.s32 %s24, %s25
        %p295 = scmp.lt.s32.totalorder %s294, 1
        %s296 = scalar_select %p295, %s294, 1
        %s297 = scalar_lea.vmem %s4, %s296
        %s298 = sadd.s32 %s24, %s25
        %v299 = vld [vmem:[%s239] sm:$0xff]
        %v300 = vld [vmem:[%s286] sm:$0x3]
        %v301 = vlaneseq
        %v302 = vshrl.u32 %v301, 7
        %v303 = vlaneseq
        %v304 = vshrl.u32 %v303, 7
        %v305 = vsub.s32 0, %v304
        %v306 = vrot.slane %v300, %v305
        %v307 = vlaneseq
        %v308 = vshrl.u32 %v307, 7
        %v309 = vsub.s32 1, %v308
        %v310 = vrot.slane %v300, %v309
        %vm311 = vcmp.eq.s32.totalorder %v302, %v306
        %vm312 = vcmp.eq.s32.totalorder %v302, %v310
        %v313 = vsel %vm311, 1, 0
        %v314 = vsel %vm312, 1, 0
        %v315 = vcvt.s32.f32 %v313
        %v316 = vcvt.s32.f32 %v314
        %v318 = vcombine.high %v299, %v299
        %v320 = vmul.f32 %v315, %v299
        %v321 = vmul.f32 %v316, %v318
        %vm322 = vcmask 1043456
        %v323 = vsel %vm322, %v320, 0.0
        %v324 = vrot.slane %v323, 4
        %v325 = vadd.f32 %v323, %v324
        %v326 = vrot.slane %v325, 2
        %v327 = vadd.f32 %v325, %v326
        %v328 = vrot.slane %v327, 1
        %v329 = vadd.f32 %v327, %v328
        %v330 = vsel %vm322, %v321, 0.0
        %v331 = vrot.slane %v330, 4
        %v332 = vadd.f32 %v330, %v331
        %v333 = vrot.slane %v332, 2
        %v334 = vadd.f32 %v332, %v333
        %v335 = vrot.slane %v334, 1
        %v336 = vadd.f32 %v334, %v335
        %v337 = vsel %vm322, %v299, -inf
        %v338 = vrot.slane %v337, 4
        %v339 = vmax.f32 %v337, %v338
        %v340 = vrot.slane %v339, 2
        %v341 = vmax.f32 %v339, %v340
        %v342 = vrot.slane %v341, 1
        %v343 = vmax.f32 %v341, %v342
        %v344 = vsel %vm322, %v318, -inf
        %v345 = vrot.slane %v344, 4
        %v346 = vmax.f32 %v344, %v345
        %v347 = vrot.slane %v346, 2
        %v348 = vmax.f32 %v346, %v347
        %v349 = vrot.slane %v348, 1
        %v350 = vmax.f32 %v348, %v349
        %v353 = vcombine.low %v343, %v350
        %v355 = vsub.f32 %v299, %v353
        %v356 = vmul.f32 %v355, 1.442695
        %v357 = vpow.pop %v356
        %v359 = vcombine.high %v357, %v357
        %v361 = vsel %vm322, %v357, 0.0
        %v362 = vrot.slane %v361, 4
        %v363 = vadd.f32 %v361, %v362
        %v364 = vrot.slane %v363, 2
        %v365 = vadd.f32 %v363, %v364
        %v366 = vrot.slane %v365, 1
        %v367 = vadd.f32 %v365, %v366
        %v368 = vsel %vm322, %v359, 0.0
        %v369 = vrot.slane %v368, 4
        %v370 = vadd.f32 %v368, %v369
        %v371 = vrot.slane %v370, 2
        %v372 = vadd.f32 %v370, %v371
        %v373 = vrot.slane %v372, 1
        %v374 = vadd.f32 %v372, %v373
        %v375 = vlog2.pop %v367
        %v376 = vmul.f32 %v375, 0.6931472
        %v377 = vlog2.pop %v374
        %v378 = vmul.f32 %v377, 0.6931472
        %v379 = vadd.f32 %v376, %v343
        %v380 = vadd.f32 %v378, %v350
        %v381 = vsub.f32 %v379, %v329
        %v382 = vsub.f32 %v380, %v336
        %v383 = vld [vmem:[%s2] sm:$0xf]
        %385 = vset.pattern.permute.xlu0 0
        %386 = vperm.xlu0 %385, %v383
        %v387 = vpop.permute.xlu0 %386
        %v389 = vmul.f32 %v315, %v387
        %v390 = vmul.f32 %v316, %v387
        %v391 = vsel %vm322, %v389, 0.0
        %v392 = vrot.slane %v391, 4
        %v393 = vadd.f32 %v391, %v392
        %v394 = vrot.slane %v393, 2
        %v395 = vadd.f32 %v393, %v394
        %v396 = vrot.slane %v395, 1
        %v397 = vadd.f32 %v395, %v396
        %v398 = vsel %vm322, %v390, 0.0
        %v399 = vrot.slane %v398, 4
        %v400 = vadd.f32 %v398, %v399
        %v401 = vrot.slane %v400, 2
        %v402 = vadd.f32 %v400, %v401
        %v403 = vrot.slane %v402, 1
        %v404 = vadd.f32 %v402, %v403
        %v405 = vmul.f32 %v397, %v381
        %v406 = vmul.f32 %v404, %v382
        %vm407 = vcmask 1040384
        %v408 = vsel %vm407, %v405, 0.0
        %v409 = vsel %vm407, %v406, 0.0
        %v410 = vadd.f32 %v408, %v409
        %411 = vadd.xlane.f32.xlu0 %v410
        %v412 = vpop.xlane.xlu0 %411
        %v413 = vrot.slane %v412, 4
        %v414 = vadd.f32 %v412, %v413
        %v415 = vrot.slane %v414, 2
        %v416 = vadd.f32 %v414, %v415
        %v417 = vrot.slane %v416, 1
        %v418 = vadd.f32 %v416, %v417
        %s419 = vtos %v418
        %v420 = vstv %s419
        %vm421 = vcmask 0
        %422 = vst.msk [vmem:[%s292] sm:$0x1] %vm421, %v420
        %v423 = vsel %vm407, %v397, 0.0
        %v424 = vsel %vm407, %v404, 0.0
        %v425 = vadd.f32 %v423, %v424
        %426 = vadd.xlane.f32.xlu0 %v425
        %v427 = vpop.xlane.xlu0 %426
        %v428 = vrot.slane %v427, 4
        %v429 = vadd.f32 %v427, %v428
        %v430 = vrot.slane %v429, 2
        %v431 = vadd.f32 %v429, %v430
        %v432 = vrot.slane %v431, 1
        %v433 = vadd.f32 %v431, %v432
        %s434 = vtos %v433
        %v435 = vstv %s434
        %436 = vst.msk [vmem:[%s297] sm:$0x1] %vm421, %v435
        %s437 = sadd.s32 %s24, %s25
        %p438 = scmp.lt.s32.totalorder %s437, 1
        %s439 = scalar_select %p438, %s437, 1
        %s440 = scalar_lea.vmem %s3, %s439
        %s441 = sadd.s32 %s24, %s25
        %p442 = scmp.lt.s32.totalorder %s441, 1
        %s443 = scalar_select %p442, %s441, 1
        %s444 = scalar_lea.vmem %s4, %s443
        // Predicated region
        $region37: #{tpu_custom_call.1} parent=31 // pred_check
          %p445 = pneg %p139
        $region38: #{tpu_custom_call.1} parent=31 // pred_check_branch
          %447 = sbr.rel (%p445) target = $region40
        $region39: #{tpu_custom_call.1} parent=31 // pred_region
          %s448 = sadd.s32 %s24, %s25
        $region40: #{tpu_custom_call.1} parent=31 // pred_fallthru
          _
        // Predicated region
        $region41: #{tpu_custom_call.1} parent=31 // pred_check
          %p449 = pneg %p167
        $region42: #{tpu_custom_call.1} parent=31 // pred_check_branch
          %451 = sbr.rel (%p449) target = $region44
        $region43: #{tpu_custom_call.1} parent=31 // pred_region
          %s452 = sadd.s32 %s24, %s25
        $region44: #{tpu_custom_call.1} parent=31 // pred_fallthru
          _
      $region32: #{tpu_custom_call.1} parent=5 // pred_fallthru
        _
      %p453 = scmp.le.s32.totalorder 2, %s14
      // Predicated region
      $region45: #{tpu_custom_call.1} parent=5 // pred_check
        %p454 = pneg %p453
      $region46: #{tpu_custom_call.1} parent=5 // pred_check_branch
        %456 = sbr.rel (%p454) target = $region48
      $region47: #{tpu_custom_call.1} parent=5 // pred_region
        %s457 = ssub.s32 %s14, 2
        // Predicated region
        $region49: #{tpu_custom_call.1} parent=47 // pred_check
          %p458 = pneg %p145
        $region50: #{tpu_custom_call.1} parent=47 // pred_check_branch
          %460 = sbr.rel (%p458) target = $region52
        $region51: #{tpu_custom_call.1} parent=47 // pred_region
          %s461 = sadd.s32 %s27, %s28
          %p462 = scmp.lt.s32.totalorder %s461, 1
          %s463 = scalar_select %p462, %s461, 1
          %s464 = scalar_lea.vmem %s3, %s463
        $region52: #{tpu_custom_call.1} parent=47 // pred_fallthru
          _
        // Predicated region
        $region53: #{tpu_custom_call.1} parent=47 // pred_check
          %p465 = pneg %p173
        $region54: #{tpu_custom_call.1} parent=47 // pred_check_branch
          %467 = sbr.rel (%p465) target = $region56
        $region55: #{tpu_custom_call.1} parent=47 // pred_region
          %s468 = sadd.s32 %s27, %s28
          %p469 = scmp.lt.s32.totalorder %s468, 1
          %s470 = scalar_select %p469, %s468, 1
          %s471 = scalar_lea.vmem %s4, %s470
        $region56: #{tpu_custom_call.1} parent=47 // pred_fallthru
          _
      $region48: #{tpu_custom_call.1} parent=5 // pred_fallthru
        _
    $region6: #{tpu_custom_call.1} parent=1 // loop_footer
      %s18 = sadd.s32 1, %s14
    $region7: #{tpu_custom_call.1} parent=1 // loop_footer_branch
      %13 = sbr.rel target = $region3
    $region8: #{tpu_custom_call.1} parent=1 // loop_exit
      _
    %472 = vsyncpa [#allocation3], 1
    %s473 = scalar_lea.sflag [#allocation3], 1
    %474 = vsyncpa %s473, 1

</llo_original>
